<compile_context>
chip_gen: v7x
topology: tpu7x:2x2x1
jax: 0.10.0
libtpu: 0.0.40
codegen_flags: <defaults>
</compile_context>

<pallas_src>
import jax
import jax.numpy as jnp
from jax.experimental import pallas as pl
from jax.experimental.pallas import tpu as pltpu


# ----------------------------- kernel ----------------------------------------


def _resblock_kernel(x_ref, w_ref, b_ref, out_ref):
    # x_ref : (C_in, TILE_N)   folded activation tile
    # w_ref : (C_out, C_in)    folded weight (fc_0 + shortcut / identity)
    # b_ref : (C_out, 1)       folded bias, f32
    acc = jnp.dot(w_ref[...], x_ref[...], preferred_element_type=jnp.float32)
    out_ref[...] = (acc + b_ref[...]).astype(out_ref.dtype)


# ----------------------------- tiling helper ---------------------------------


def _pick_tile_n(c_in, c_out, n, vmem_budget_bytes=16 * 1024 * 1024):
    """Largest lane-dense tile along the flattened (B*L) position axis."""
    if n <= 512:
        return n  # single block == full array dim (always a legal block shape)
    # double-buffered x tile + out tile must fit the budget (f32-conservative)
    per_col = 2 * (c_in + c_out) * 4
    max_cols = max(128, vmem_budget_bytes // per_col)
    return max(128, min(n, 4096, (max_cols // 128) * 128))


# ----------------------------- wrapper ----------------------------------------


def resnet_block_conv1d(x, w0, b0, ws=None, bs=None, *, compute_dtype=None):
    """Forward pass of ResnetBlockConv1d.

    x  : (B, C_in, L)
    w0 : (C_out, C_in)   fc_0 1x1-conv weight (kernel dim squeezed)
    b0 : (C_out,)        fc_0 bias
    ws : (C_out, C_in)   shortcut weight, or None when size_in == size_out
    bs : (C_out,)        shortcut bias, or None
    compute_dtype : optional (e.g. jnp.bfloat16) to halve matmul-path HBM
        traffic; accumulation stays f32 and the output keeps x.dtype.
    returns (B, C_out, L)
    """
    B, C_in, L = x.shape
    C_out = w0.shape[0]
    out_dtype = x.dtype

    # --- exact algebraic fold of the residual path into one affine map -------
    if ws is None:
        assert C_in == C_out, "identity shortcut requires size_in == size_out"
        w_eff = w0 + jnp.eye(C_out, dtype=w0.dtype)
        b_eff = b0
    else:
        w_eff = w0 + ws
        b_eff = b0 + bs

    # --- flatten batch into the lane axis: (C_in, B*L) -----------------------
    n = B * L
    x_flat = jnp.transpose(x, (1, 0, 2)).reshape(C_in, n)

    if compute_dtype is not None:
        x_flat = x_flat.astype(compute_dtype)
        w_eff = w_eff.astype(compute_dtype)
    b_2d = b_eff.reshape(C_out, 1).astype(jnp.float32)

    # --- tile the flattened position axis -------------------------------------
    tile_n = _pick_tile_n(C_in, C_out, n)
    n_tiles = pl.cdiv(n, tile_n)
    n_pad = n_tiles * tile_n
    if n_pad != n:
        x_flat = jnp.pad(x_flat, ((0, 0), (0, n_pad - n)))

    out_flat = pl.pallas_call(
        _resblock_kernel,
        out_shape=jax.ShapeDtypeStruct((C_out, n_pad), out_dtype),
        grid=(n_tiles,),
        in_specs=[
            pl.BlockSpec((C_in, tile_n), lambda i: (0, i)),   # x tile
            pl.BlockSpec((C_out, C_in), lambda i: (0, 0)),    # folded weight
            pl.BlockSpec((C_out, 1), lambda i: (0, 0)),       # folded bias
        ],
        out_specs=pl.BlockSpec((C_out, tile_n), lambda i: (0, i)),
        compiler_params=pltpu.CompilerParams(
            dimension_semantics=("parallel",),
            vmem_limit_bytes=32 * 1024 * 1024,
        ),
    )(x_flat, w_eff, b_2d)

    if n_pad != n:
        out_flat = out_flat[:, :n]
    return out_flat.reshape(C_out, B, L).transpose(1, 0, 2)


# ----------------------------- reference --------------------------------------


def resnet_block_conv1d_ref(x, w0, b0, ws=None, bs=None):
    prec = jax.lax.Precision.HIGHEST
    dx = jnp.einsum("oc,bcl->bol", w0, x, precision=prec) + b0[None, :, None]
    if ws is None:
        x_s = x
    else:
        x_s = jnp.einsum("oc,bcl->bol", ws, x, precision=prec) + bs[None, :, None]
    return x_s + dx


# ----------------------------- main --------------------------------------------


if __name__ == "__main__":
    key = jax.random.PRNGKey(0)

    # ---- config 1: size_in != size_out  (conv shortcut) ----
    B, C_in, C_out, L = 2, 4, 8, 16
    k0, k1, k2, k3, k4, key = jax.random.split(key, 6)
    x = jax.random.normal(k0, (B, C_in, L), dtype=jnp.float32)
    w0 = jax.random.normal(k1, (C_out, C_in), dtype=jnp.float32) * (1.0 / C_in ** 0.5)
    b0 = jax.random.normal(k2, (C_out,), dtype=jnp.float32) * 0.1
    ws = jax.random.normal(k3, (C_out, C_in), dtype=jnp.float32) * (1.0 / C_in ** 0.5)
    bs = jax.random.normal(k4, (C_out,), dtype=jnp.float32) * 0.1

    out1 = jax.block_until_ready(resnet_block_conv1d(x, w0, b0, ws, bs))
    ref1 = resnet_block_conv1d_ref(x, w0, b0, ws, bs)
    assert out1.shape == (B, C_out, L)
    assert jnp.allclose(out1, ref1, atol=1e-5, rtol=1e-5), "shortcut case mismatch"

    # ---- config 2: size_in == size_out  (identity shortcut) ----
    C = 8
    k5, k6, k7, key = jax.random.split(key, 4)
    x2 = jax.random.normal(k5, (B, C, L), dtype=jnp.float32)
    w0b = jax.random.normal(k6, (C, C), dtype=jnp.float32) * (1.0 / C ** 0.5)
    b0b = jax.random.normal(k7, (C,), dtype=jnp.float32) * 0.1

    out2 = jax.block_until_ready(resnet_block_conv1d(x2, w0b, b0b))
    ref2 = resnet_block_conv1d_ref(x2, w0b, b0b)
    assert jnp.allclose(out2, ref2, atol=1e-5, rtol=1e-5), "identity case mismatch"

    # ---- config 3: larger L exercises the multi-tile (padded, lane-dense) path
    B3, C_in3, C_out3, L3 = 2, 32, 64, 2200          # B*L = 4400 -> two 4096 tiles
    k8, k9, k10, k11, k12, key = jax.random.split(key, 6)
    x3 = jax.random.normal(k8, (B3, C_in3, L3), dtype=jnp.float32)
    w03 = jax.random.normal(k9, (C_out3, C_in3), dtype=jnp.float32) * (1.0 / C_in3 ** 0.5)
    b03 = jax.random.normal(k10, (C_out3,), dtype=jnp.float32) * 0.1
    ws3 = jax.random.normal(k11, (C_out3, C_in3), dtype=jnp.float32) * (1.0 / C_in3 ** 0.5)
    bs3 = jax.random.normal(k12, (C_out3,), dtype=jnp.float32) * 0.1

    out3 = jax.block_until_ready(resnet_block_conv1d(x3, w03, b03, ws3, bs3))
    ref3 = resnet_block_conv1d_ref(x3, w03, b03, ws3, bs3)
    assert jnp.allclose(out3, ref3, atol=1e-4, rtol=1e-4), "tiled case mismatch"

    print("KERNEL_OK")
</pallas_src>

<mosaic_0001>
module attributes {stable_mosaic.version = 11 : i64} {
  func.func @_resblock_kernel(%arg0: i32, %arg1: memref<4x32xf32, #tpu.memory_space<vmem>>, %arg2: memref<8x4xf32, #tpu.memory_space<vmem>>, %arg3: memref<8x1xf32, #tpu.memory_space<vmem>>, %arg4: memref<8x32xf32, #tpu.memory_space<vmem>>) attributes {dimension_semantics = [#tpu.dimension_semantics<parallel>], iteration_bounds = array<i64: 1>, scalar_prefetch = 0 : i64, scratch_operands = 0 : i64, tpu.core_type = #tpu.core_type<tc>, window_params = [{transform_indices = @transform_0, window_bounds = array<i64: 4, 32>}, {pipeline_mode = #tpu.pipeline_mode<synchronous>, transform_indices = @transform_1, window_bounds = array<i64: 8, 4>}, {pipeline_mode = #tpu.pipeline_mode<synchronous>, transform_indices = @transform_2, window_bounds = array<i64: 8, 1>}, {transform_indices = @transform_3, window_bounds = array<i64: 8, 32>}]} {
    %c0 = arith.constant 0 : index
    %c0_0 = arith.constant 0 : index
    %0 = vector.load %arg2[%c0, %c0_0] : memref<8x4xf32, #tpu.memory_space<vmem>>, vector<8x4xf32>
    %c0_1 = arith.constant 0 : index
    %c0_2 = arith.constant 0 : index
    %1 = vector.load %arg1[%c0_1, %c0_2] : memref<4x32xf32, #tpu.memory_space<vmem>>, vector<4x32xf32>
    %cst = arith.constant dense<0.000000e+00> : vector<8x32xf32>
    %2 = tpu.matmul %0, %1, %cst {dimension_numbers = #tpu.dot_dimension_numbers<[1], [0], [0], [1], [0, 0, 1, 1], [], []>} : vector<8x4xf32>, vector<4x32xf32>, vector<8x32xf32> -> vector<8x32xf32>
    %c0_3 = arith.constant 0 : index
    %c0_4 = arith.constant 0 : index
    %3 = vector.load %arg3[%c0_3, %c0_4] : memref<8x1xf32, #tpu.memory_space<vmem>>, vector<8x1xf32>
    %4 = vector.broadcast %3 : vector<8x1xf32> to vector<8x32xf32>
    %5 = arith.addf %2, %4 : vector<8x32xf32>
    %c0_5 = arith.constant 0 : index
    %c0_6 = arith.constant 0 : index
    %6 = vector.load %arg4[%c0_5, %c0_6] : memref<8x32xf32, #tpu.memory_space<vmem>>, vector<8x32xf32>
    tpu.vector_store %arg4[%c0_5, %c0_6], %5 {strides = array<i32>} : memref<8x32xf32, #tpu.memory_space<vmem>>, vector<8x32xf32>,
    return
  }
  func.func @transform_0(%arg0: i32) -> (i32, i32) {
    %c0_i32 = arith.constant 0 : i32
    %c0_i32_0 = arith.constant 0 : i32
    return %c0_i32, %arg0 : i32, i32
  }
  func.func @transform_1(%arg0: i32) -> (i32, i32) {
    %c0_i32 = arith.constant 0 : i32
    %c0_i32_0 = arith.constant 0 : i32
    %c0_i32_1 = arith.constant 0 : i32
    return %c0_i32, %c0_i32_0 : i32, i32
  }
  func.func @transform_2(%arg0: i32) -> (i32, i32) {
    %c0_i32 = arith.constant 0 : i32
    %c0_i32_0 = arith.constant 0 : i32
    %c0_i32_1 = arith.constant 0 : i32
    return %c0_i32, %c0_i32_0 : i32, i32
  }
  func.func @transform_3(%arg0: i32) -> (i32, i32) {
    %c0_i32 = arith.constant 0 : i32
    %c0_i32_0 = arith.constant 0 : i32
    return %c0_i32, %arg0 : i32, i32
  }
}

</mosaic_0001>

<llo_original>
// kernel: tpu_custom_call.1
$region0: #{tpu_custom_call.1}
  #allocation0 [shape = 'u32[]', space=smem, size = 0x4, offset = 0x4, fixed_abs, tag = 'smem constant byte address 0x4 - core index']
  #allocation1 [shape = 'u32[144,128]{1,0:T(1,128)}', space=vmem, size = 0x12000, scoped, tag = 'internal scratch']
  %s0 = inlined_call_operand.vmem [shape: f32[4,32], index: 0, kind: input, shape index: {}]
  %s1 = inlined_call_operand.vmem [shape: f32[8,4], index: 1, kind: input, shape index: {}]
  %s2 = inlined_call_operand.vmem [shape: f32[8,1], index: 2, kind: input, shape index: {}]
  %s3 = inlined_call_operand.hbm [shape: f32[8,32], index: 3, kind: output, shape index: {}]
  %s4 = sld [smem:[#allocation0]]
  $region22: #{tpu_custom_call.1} parent=0
    _
  %s6 = ssub.s32 1, %s4
  %s7 = scalar_select 0, %s6, %s4
  $region1: #{tpu_custom_call.1} parent=0
    #allocation2 [shape = 'u8[4096]{0}', space=vmem, size = 0x1000, scoped, tag = 'output window, operand 0, single buffered']
    #allocation3 [shape = 's32[1]{0}', space=sflag, size = 0x4, scoped, tag = 'scoped memory for tpu_custom_call.1']
    %8 = vsyncpa [#allocation3], 0
    // Predicated region
    $region2: #{tpu_custom_call.1} parent=1 // pred_check
      _
    $region3: #{tpu_custom_call.1} parent=1 // pred_check_branch
      %10 = sbr.rel (0) target = $region5
    $region4: #{tpu_custom_call.1} parent=1 // pred_region
      _
    $region5: #{tpu_custom_call.1} parent=1 // pred_fallthru
      _
    // Predicated region
    $region6: #{tpu_custom_call.1} parent=1 // pred_check
      _
    $region7: #{tpu_custom_call.1} parent=1 // pred_check_branch
      %12 = sbr.rel (0) target = $region9
    $region8: #{tpu_custom_call.1} parent=1 // pred_region
      _
    $region9: #{tpu_custom_call.1} parent=1 // pred_fallthru
      _
    // Predicated region
    $region10: #{tpu_custom_call.1} parent=1 // pred_check
      _
    $region11: #{tpu_custom_call.1} parent=1 // pred_check_branch
      %14 = sbr.rel (0) target = $region13
    $region12: #{tpu_custom_call.1} parent=1 // pred_region
      _
    $region13: #{tpu_custom_call.1} parent=1 // pred_fallthru
      _
    %v15 = vld [vmem:[%s1] sm:$0xff]
    %v16 = vld [vmem:[%s0] sm:$0xf]
    %v17 = vld [vmem:[%s2] sm:$0xff]
    %19 = vset.pattern.permute.xlu0 0
    %20 = vperm.xlu0 %19, %v17
    %v21 = vpop.permute.xlu0 %20
    %vm23 = vcmask 31744
    %v25 = vsel %vm23, %v15, 0
    %vm27 = vcmask 1043456
    %v29 = vsel %vm27, %v16, 0
    %31 = vmatprep.subr.mxu0 0.0
    %32 = vmatpush1.msra.mxu0 %v29
    %33 = vmatprep.subr.mxu0 0.0
    %34 = vmatpush1.msra.mxu0 0.0
    %35 = vmatprep.subr.mxu0 0.0
    %36 = vmatpush1.msra.mxu0 0.0
    %37 = vmatprep.subr.mxu0 0.0
    %38 = vmatpush1.msra.mxu0 0.0
    %39 = vmatprep.subr.mxu0 0.0
    %40 = vmatpush1.msra.mxu0 0.0
    %41 = vmatprep.subr.mxu0 0.0
    %42 = vmatpush1.msra.mxu0 0.0
    %43 = vmatprep.subr.mxu0 0.0
    %44 = vmatpush1.msra.mxu0 0.0
    %45 = vmatprep.subr.mxu0 0.0
    %46 = vmatpush1.msra.mxu0 0.0
    %47 = vmatprep.subr.mxu0 0.0
    %48 = vmatpush1.msra.mxu0 0.0
    %49 = vmatprep.subr.mxu0 0.0
    %50 = vmatpush1.msra.mxu0 0.0
    %51 = vmatprep.subr.mxu0 0.0
    %52 = vmatpush1.msra.mxu0 0.0
    %53 = vmatprep.subr.mxu0 0.0
    %54 = vmatpush1.msra.mxu0 0.0
    %55 = vmatprep.subr.mxu0 0.0
    %56 = vmatpush1.msra.mxu0 0.0
    %57 = vmatprep.subr.mxu0 0.0
    %58 = vmatpush1.msra.mxu0 0.0
    %59 = vmatprep.subr.mxu0 0.0
    %60 = vmatpush1.msra.mxu0 0.0
    %61 = vmatprep.subr.mxu0 0.0
    %62 = vmatpush1.msra.mxu0 0.0
    %63 = vmatprep.subr.mxu0 0.0
    %64 = vmatpush1.msra.mxu0 0.0
    %65 = vmatprep.subr.mxu0 0.0
    %66 = vmatpush1.msra.mxu0 0.0
    %67 = vmatprep.subr.mxu0 0.0
    %68 = vmatpush1.msra.mxu0 0.0
    %69 = vmatprep.subr.mxu0 0.0
    %70 = vmatpush1.msra.mxu0 0.0
    %71 = vmatprep.subr.mxu0 0.0
    %72 = vmatpush1.msra.mxu0 0.0
    %73 = vmatprep.subr.mxu0 0.0
    %74 = vmatpush1.msra.mxu0 0.0
    %75 = vmatprep.subr.mxu0 0.0
    %76 = vmatpush1.msra.mxu0 0.0
    %77 = vmatprep.subr.mxu0 0.0
    %78 = vmatpush1.msra.mxu0 0.0
    %79 = vmatprep.subr.mxu0 0.0
    %80 = vmatpush1.msra.mxu0 0.0
    %81 = vmatprep.subr.mxu0 0.0
    %82 = vmatpush1.msra.mxu0 0.0
    %83 = vmatprep.subr.mxu0 0.0
    %84 = vmatpush1.msra.mxu0 0.0
    %85 = vmatprep.subr.mxu0 0.0
    %86 = vmatpush1.msra.mxu0 0.0
    %87 = vmatprep.subr.mxu0 0.0
    %88 = vmatpush1.msra.mxu0 0.0
    %89 = vmatprep.subr.mxu0 0.0
    %90 = vmatpush1.msra.mxu0 0.0
    %91 = vmatprep.subr.mxu0 0.0
    %92 = vmatpush1.msra.mxu0 0.0
    %93 = vmatprep.subr.mxu0 0.0
    %94 = vmatpush1.msra.mxu0 0.0
    %95 = vmatprep.mubr.f32.mxu0 0.0
    %96 = vmatmul.mubr.f32.gmra.mrb[0].mxu0 %v25
    %v97 = vpop.f32.mrb[0].mxu0
    %v98 = vadd.f32 %v21, %v97
    %v99 = vpop.f32.mrb[0].mxu0
    %100 = vdwg.mxu0
    %vm101 = vcmask 261120
    %102 = vst.msk [vmem:[#allocation2] sm:$0xff] %vm101, %v98
    // Predicated region
    $region14: #{tpu_custom_call.1} parent=1 // pred_check
      _
    $region15: #{tpu_custom_call.1} parent=1 // pred_check_branch
      %104 = sbr.rel (0) target = $region17
    $region16: #{tpu_custom_call.1} parent=1 // pred_region
      %s106 = ssub.s32 128, 128
      %107 = vsyncadd [#allocation3], %s106
      %s109 = sshll.u32 [#allocation2], 4
      %s110 = int_to_ptr.vmem [resolvable:$true] %s109
      %112 = dma.vmem_to_hbm [thread:$0]  %s110, 128, %s3, [#allocation3]
    $region17: #{tpu_custom_call.1} parent=1 // pred_fallthru
      _
    // Predicated region
    $region18: #{tpu_custom_call.1} parent=1 // pred_check
      _
    $region19: #{tpu_custom_call.1} parent=1 // pred_check_branch
      %114 = sbr.rel (0) target = $region21
    $region20: #{tpu_custom_call.1} parent=1 // pred_region
      %115 = dma.done [#allocation3], 128
    $region21: #{tpu_custom_call.1} parent=1 // pred_fallthru
      _
    %116 = vsyncpa [#allocation3], 1

</llo_original>
